<compile_context>
chip_gen: v7x
topology: tpu7x:2x2x1
jax: 0.10.0
libtpu: 0.0.40
codegen_flags: <defaults>
</compile_context>

<pallas_src>
import math
import functools

import jax
import jax.numpy as jnp
from jax.experimental import pallas as pl
from jax.experimental.pallas import tpu as pltpu

_LANES = 1024                          # lane-dense last dim (multiple of 128)
_TILE_BYTES = 4 * 1024 * 1024          # ~4 MiB per pipelined block
_VMEM_LIMIT_BYTES = 32 * 1024 * 1024   # 4 bufs x 4 MiB = 16 MiB + headroom
_MIN_GRID_STEPS = 4                    # keep >= 4 blocks so v7x megacore splits
_SMALL_TOTAL = 32 * 1024               # whole-array single block below this
_INV_SQRT2 = 1.0 / math.sqrt(2.0)
_NEG_SLOPE = 0.2


# ------------------------- Pallas kernels ----------------------------------

def _gelu_kernel(x_ref, o_ref):
    # Exact (erf-based) GELU: x * 0.5 * (1 + erf(x / sqrt(2))), matching the
    # PyTorch reference.  (v7x note: if the erf polynomial ever makes this
    # VALU-bound, the tanh-approx GELU moves the transcendental onto the EUP
    # slot -- but it changes numerics, so the exact form is kept here.)
    x = x_ref[...]
    o_ref[...] = x * 0.5 * (1.0 + jax.lax.erf(x * _INV_SQRT2))


def _leakyrelu_kernel(x_ref, o_ref):
    # LeakyReLU with negative slope 0.2 (same values as F.leaky_relu_).
    x = x_ref[...]
    o_ref[...] = jnp.where(x >= 0, x, _NEG_SLOPE * x)


_KERNELS = {"gelu": _gelu_kernel, "leakyrelu": _leakyrelu_kernel}


# ------------------------- layout helpers ----------------------------------

def _lane_layout(total):
    """(rows, cols) with rows*cols == total and cols a multiple of 128."""
    for cols in (_LANES, 512, 256, 128):
        if total % cols == 0:
            return total // cols, cols
    return None


def _choose_block_rows(rows, cols, itemsize):
    """Row-tile size: multiple of 8 (or == rows), ~4 MiB budget, >= 4 steps."""
    if rows <= 8:
        return rows                                    # one full-array block
    budget = max(8, (_TILE_BYTES // (cols * itemsize)) // 8 * 8)
    per_step = max(8, (pl.cdiv(rows, _MIN_GRID_STEPS) // 8) * 8)
    return min(budget, per_step)


def _run_tiled(kernel, x2d):
    rows, cols = x2d.shape
    block_rows = _choose_block_rows(rows, cols, x2d.dtype.itemsize)
    return pl.pallas_call(
        kernel,
        out_shape=jax.ShapeDtypeStruct((rows, cols), x2d.dtype),
        grid=(pl.cdiv(rows, block_rows),),     # uneven last block is masked
        in_specs=[pl.BlockSpec((block_rows, cols), lambda i: (i, 0))],
        out_specs=pl.BlockSpec((block_rows, cols), lambda i: (i, 0)),
        compiler_params=pltpu.CompilerParams(
            dimension_semantics=("parallel",),
            vmem_limit_bytes=_VMEM_LIMIT_BYTES),
    )(x2d)


def _run_whole(kernel, x2d):
    # No grid / BlockSpec: whole (small) array as a single VMEM block, so the
    # (8, 128) divisibility constraint does not apply.
    return pl.pallas_call(
        kernel,
        out_shape=jax.ShapeDtypeStruct(x2d.shape, x2d.dtype),
    )(x2d)


# ------------------------- wrapper ------------------------------------------

@functools.partial(jax.jit, static_argnames=("act_layer",))
def custom_act(x, act_layer):
    """Pallas implementation of CustomAct.forward(x)."""
    if act_layer not in _KERNELS:
        raise ValueError(f"unsupported act_layer: {act_layer}")
    kernel = _KERNELS[act_layer]

    orig_shape = x.shape
    total = x.size
    if total == 0:
        return x

    layout = _lane_layout(total)
    if layout is not None:
        # Common path: free row-major reshapes, no padding / slicing passes.
        rows, cols = layout
        return _run_tiled(kernel, x.reshape(rows, cols)).reshape(orig_shape)

    if total <= _SMALL_TOTAL:
        # Small, non-128-divisible input: one whole-array block, no padding.
        return _run_whole(kernel, x.reshape(1, total)).reshape(orig_shape)

    # Rare fallback (large and not a multiple of 128): minimal zero-pad to the
    # next multiple of _LANES (< 1024 junk elements), tiled kernel, slice back.
    # gelu(0) == leakyrelu(0) == 0 and the pad region is discarded anyway.
    padded_total = pl.cdiv(total, _LANES) * _LANES
    flat = jnp.pad(x.reshape(-1), (0, padded_total - total))
    out = _run_tiled(kernel, flat.reshape(padded_total // _LANES, _LANES))
    return out.reshape(-1)[:total].reshape(orig_shape)


# ------------------------- pure-JAX reference ------------------------------

def _ref_custom_act(x, act_layer):
    if act_layer == "gelu":
        return x * 0.5 * (1.0 + jax.lax.erf(x * _INV_SQRT2))
    if act_layer == "leakyrelu":
        return jnp.where(x >= 0, x, _NEG_SLOPE * x)
    raise ValueError(act_layer)


# ------------------------- main --------------------------------------------

if __name__ == "__main__":
    key = jax.random.PRNGKey(0)
    shapes = [
        (2, 4, 16, 16),   # 2048 elems  -> lane-dense fast path, single block
        (4, 13, 16, 16),  # 13312 elems -> 2-step grid with masked edge block
        (3, 7, 5),        # 105 elems   -> whole-array small path (no padding)
    ]

    ok = True
    for i, shape in enumerate(shapes):
        x = jax.random.normal(jax.random.fold_in(key, i), shape, jnp.float32) * 2.0
        for act in ("gelu", "leakyrelu"):
            out = jax.block_until_ready(custom_act(x, act))
            ref = jax.block_until_ready(_ref_custom_act(x, act))
            assert out.shape == x.shape, (act, shape, out.shape)
            assert out.dtype == x.dtype, (act, shape, out.dtype)
            close = bool(jnp.allclose(out, ref, atol=1e-5, rtol=1e-5))
            assert close, (act, shape, float(jnp.max(jnp.abs(out - ref))))
            ok &= close

    if ok:
        print("KERNEL_OK")
</pallas_src>

<mosaic_0001>
module attributes {stable_mosaic.version = 11 : i64} {
  func.func @_gelu_kernel(%arg0: i32, %arg1: memref<2x1024xf32, #tpu.memory_space<vmem>>, %arg2: memref<2x1024xf32, #tpu.memory_space<vmem>>) attributes {dimension_semantics = [#tpu.dimension_semantics<parallel>], iteration_bounds = array<i64: 1>, scalar_prefetch = 0 : i64, scratch_operands = 0 : i64, tpu.core_type = #tpu.core_type<tc>, window_params = [{transform_indices = @transform_0, window_bounds = array<i64: 2, 1024>}, {transform_indices = @transform_1, window_bounds = array<i64: 2, 1024>}]} {
    %c0 = arith.constant 0 : index
    %c0_0 = arith.constant 0 : index
    %0 = vector.load %arg1[%c0, %c0_0] : memref<2x1024xf32, #tpu.memory_space<vmem>>, vector<2x1024xf32>
    %cst = arith.constant 5.000000e-01 : f32
    %1 = vector.broadcast %cst : f32 to vector<2x1024xf32>
    %2 = arith.mulf %0, %1 : vector<2x1024xf32>
    %cst_1 = arith.constant 0.707106769 : f32
    %3 = vector.broadcast %cst_1 : f32 to vector<2x1024xf32>
    %4 = arith.mulf %0, %3 : vector<2x1024xf32>
    %5 = math.erf %4 : vector<2x1024xf32>
    %cst_2 = arith.constant 1.000000e+00 : f32
    %6 = vector.broadcast %cst_2 : f32 to vector<2x1024xf32>
    %7 = arith.addf %6, %5 : vector<2x1024xf32>
    %8 = arith.mulf %2, %7 : vector<2x1024xf32>
    %c0_3 = arith.constant 0 : index
    %c0_4 = arith.constant 0 : index
    %9 = vector.load %arg2[%c0_3, %c0_4] : memref<2x1024xf32, #tpu.memory_space<vmem>>, vector<2x1024xf32>
    tpu.vector_store %arg2[%c0_3, %c0_4], %8 {strides = array<i32>} : memref<2x1024xf32, #tpu.memory_space<vmem>>, vector<2x1024xf32>,
    return
  }
  func.func @transform_0(%arg0: i32) -> (i32, i32) {
    %c0_i32 = arith.constant 0 : i32
    %c0_i32_0 = arith.constant 0 : i32
    return %arg0, %c0_i32 : i32, i32
  }
  func.func @transform_1(%arg0: i32) -> (i32, i32) {
    %c0_i32 = arith.constant 0 : i32
    %c0_i32_0 = arith.constant 0 : i32
    return %arg0, %c0_i32 : i32, i32
  }
}

</mosaic_0001>

<llo_original>
// kernel: custom_act.1
$region0: #{custom_act.1}
  #allocation0 [shape = 'u32[]', space=smem, size = 0x4, offset = 0x4, fixed_abs, tag = 'smem constant byte address 0x4 - core index']
  #allocation1 [shape = 'u32[144,128]{1,0:T(1,128)}', space=vmem, size = 0x12000, scoped, tag = 'internal scratch']
  %s0 = inlined_call_operand.vmem [shape: f32[2,1024], index: 0, kind: input, shape index: {}]
  %s1 = inlined_call_operand.vmem [shape: f32[2,1024], index: 1, kind: output, shape index: {}]
  %s2 = sld [smem:[#allocation0]]
  $region14: #{custom_act.1} parent=0
    _
  %s4 = ssub.s32 1, %s2
  %s5 = scalar_select 0, %s4, %s2
  // Predicated region
  $region2: #{custom_act.1} parent=0 // pred_check
    _
  $region3: #{custom_act.1} parent=0 // pred_check_branch
    %7 = sbr.rel (0) target = $region5
  $region4: #{custom_act.1} parent=0 // pred_region
    _
  $region5: #{custom_act.1} parent=0 // pred_fallthru
    _
  %v8 = vld [vmem:[%s0] sm:$0xff]
  %v9 = vld [vmem:[%s0 + $0x8] sm:$0xff]
  %v10 = vmul.f32 %v8, 0.5
  %v11 = vmul.f32 %v9, 0.5
  %v12 = vmul.f32 %v8, 0.70710677
  %v13 = vmul.f32 %v9, 0.70710677
  %v14 = verf.f32.pop %v12
  %v15 = verf.f32.pop %v13
  %v16 = vadd.f32 %v14, 1.0
  %v17 = vadd.f32 %v15, 1.0
  %v18 = vmul.f32 %v10, %v16
  %v19 = vmul.f32 %v11, %v17
  %20 = vst [vmem:[%s1] sm:$0xff] %v18
  %21 = vst [vmem:[%s1 + $0x8] sm:$0xff] %v19
  // Predicated region
  $region6: #{custom_act.1} parent=0 // pred_check
    _
  $region7: #{custom_act.1} parent=0 // pred_check_branch
    %23 = sbr.rel (0) target = $region9
  $region8: #{custom_act.1} parent=0 // pred_region
    _
  $region9: #{custom_act.1} parent=0 // pred_fallthru
    _
  // Predicated region
  $region10: #{custom_act.1} parent=0 // pred_check
    _
  $region11: #{custom_act.1} parent=0 // pred_check_branch
    %25 = sbr.rel (0) target = $region13
  $region12: #{custom_act.1} parent=0 // pred_region
    _
  $region13: #{custom_act.1} parent=0 // pred_fallthru
    _

</llo_original>
